<compile_context>
chip_gen: v5e
topology: v5e:2x2
jax: 0.10.0
libtpu: 0.0.40
codegen_flags: <defaults>
</compile_context>

<pallas_src>
import numpy as np
import jax
import jax.numpy as jnp
from jax.experimental import pallas as pl
from jax.experimental.pallas import tpu as pltpu


# ---------------------------------------------------------------------------
# Packed-parameter slab layout (rows of a (184, 64) f32 slab; each block is
# 8-row aligned so every in-kernel view is a cheap static slice).
#
# Lane layouts (channel-major, stride = conv output length):
#   p1 lanes: (ci, li) -> ci*11 + li   (valid li 0..8)   after pool1
#   p2 lanes: (ci, li) -> ci*9  + li   (valid li 0..6)   after pool2+relu
#   p3 lanes: (ci, li) -> ci*7  + li   (valid li 0..4)   after pool3+relu
# The packed matrices have zero rows at the invalid (garbage) lane positions.
# ---------------------------------------------------------------------------
R_M1 = 0        # (8, 22)  conv1 as matrix, env wrap-around folded in
R_M2 = 8        # (20, 36) conv2 as matrix on the p1 lane layout
R_M3 = 32       # (34, 56) conv3 as matrix on the p2 lane layout
R_FC1 = 72      # (54, 20) fc1 weight on the p3 lane layout (flatten folded in)
R_FC2 = 128     # (20, 16) fc2 weight, transposed to (in, out)
R_WIH = 152     # (16, 32) w_ih.T   (input half of the LSTM gate projection)
R_WHH = 168     # (8, 32)  w_hh.T   (recurrent half)
R_BIAS = 176    # +0: conv1 bias(22) +1: conv2 bias(36) +2: conv3 bias(56)
                # +3: fc1 bias(20)   +4: fc2 bias(16)   +5: b_ih + b_hh (32)
SLAB_ROWS = 184
SLAB_COLS = 64


# ---------------------------------------------------------------------------
# Pallas kernel: full T-step rollout (batched conv/fc + unrolled LSTMCell loop)
# ---------------------------------------------------------------------------
def lstm_dqn_kernel(env_ref, slab_ref, state_ref, hseq_ref, state_out_ref):
    T = env_ref.shape[0]
    f32 = jnp.float32

    def dot(a, b):
        return jnp.dot(a, b, preferred_element_type=f32)

    e = env_ref[...]                                                 # (T, 8)

    # --- feed-forward path, batched over all T timesteps (M = T matmuls) ---
    # conv1 -> pool1 (no ReLU after the first block, as in torch)
    c1 = dot(e, slab_ref[R_M1:R_M1 + 8, 0:22]) \
        + slab_ref[R_BIAS:R_BIAS + 1, 0:22]                          # (T, 22)
    p1 = jnp.maximum(jnp.maximum(c1[:, 0:20], c1[:, 1:21]), c1[:, 2:22])

    # conv2 -> pool2 -> relu
    c2 = dot(p1, slab_ref[R_M2:R_M2 + 20, 0:36]) \
        + slab_ref[R_BIAS + 1:R_BIAS + 2, 0:36]                      # (T, 36)
    p2 = jnp.maximum(
        jnp.maximum(jnp.maximum(c2[:, 0:34], c2[:, 1:35]), c2[:, 2:36]), 0.0)

    # conv3 -> pool3 -> relu
    c3 = dot(p2, slab_ref[R_M3:R_M3 + 34, 0:56]) \
        + slab_ref[R_BIAS + 2:R_BIAS + 3, 0:56]                      # (T, 56)
    p3 = jnp.maximum(
        jnp.maximum(jnp.maximum(c3[:, 0:54], c3[:, 1:55]), c3[:, 2:56]), 0.0)

    # fc_layer1 + relu (flatten order folded into the packed weight rows)
    y = jnp.maximum(
        dot(p3, slab_ref[R_FC1:R_FC1 + 54, 0:20])
        + slab_ref[R_BIAS + 3:R_BIAS + 4, 0:20], 0.0)                # (T, 20)
    # fc_layer2 + relu
    z = jnp.maximum(
        dot(y, slab_ref[R_FC2:R_FC2 + 20, 0:16])
        + slab_ref[R_BIAS + 4:R_BIAS + 5, 0:16], 0.0)                # (T, 16)
    # input half of the LSTM gates (z @ w_ih.T + b_ih + b_hh), all timesteps
    gi = dot(z, slab_ref[R_WIH:R_WIH + 16, 0:32]) \
        + slab_ref[R_BIAS + 5:R_BIAS + 6, 0:32]                      # (T, 32)

    whh = slab_ref[R_WHH:R_WHH + 8, 0:32]                            # (8, 32)

    # Single-tanh gate activation constants (hoisted out of the loop):
    #   sigmoid(x) = 0.5*tanh(0.5*x) + 0.5 on the i/f/o lanes, plain tanh on g.
    lane = jax.lax.broadcasted_iota(jnp.int32, (1, 32), 1)
    is_g = jnp.logical_and(lane >= 16, lane < 24)
    gate_s = jnp.where(is_g, 1.0, 0.5).astype(f32)                   # pre/post scale
    gate_b = jnp.where(is_g, 0.0, 0.5).astype(f32)                   # post offset

    # --- recurrent loop (statically unrolled; only tiny serial work left) ---
    hx = state_ref[0:1, :]                                           # (1, 8)
    cx = state_ref[1:2, :]                                           # (1, 8)
    for t in range(T):
        gates = gi[t:t + 1, :] + dot(hx, whh)                        # (1, 32)
        act = jnp.tanh(gates * gate_s) * gate_s + gate_b             # one EUP tanh
        i_g = act[:, 0:8]
        f_g = act[:, 8:16]
        g_g = act[:, 16:24]
        o_g = act[:, 24:32]
        cx = f_g * cx + i_g * g_g
        hx = o_g * jnp.tanh(cx)
        hseq_ref[t:t + 1, :] = hx                                    # q_table at step t

    state_out_ref[0:1, :] = hx
    state_out_ref[1:2, :] = cx


# ---------------------------------------------------------------------------
# One-time parameter prep: pack everything into a single f32 slab (host-side).
# All conv-tap splitting, im2col-style banding, flatten folding, transposes
# and bias fusion happen here, once, never on the hot path.
# ---------------------------------------------------------------------------
def pack_params(params):
    p = {k: np.asarray(v, np.float32) for k, v in params.items()}
    slab = np.zeros((SLAB_ROWS, SLAB_COLS), np.float32)

    def conv_mat(w, lin, in_stride):
        """Conv1d(k=3, s=1, p=1) as a dense matrix.

        Input lane position of (ci, li) is ci*in_stride + li; output lane
        position of (co, lo) is co*lin + lo.  Rows at unused (garbage) lane
        positions stay zero."""
        cout, cin, _ = w.shape
        m = np.zeros(((cin - 1) * in_stride + lin, cout * lin), np.float32)
        for co in range(cout):
            for ci in range(cin):
                for lo in range(lin):
                    for k in range(3):
                        li = lo + k - 1
                        if 0 <= li < lin:
                            m[ci * in_stride + li, co * lin + lo] += w[co, ci, k]
        return m

    # conv1: build on the wrapped length-11 input, then fold the wrap
    # (x[8:11] == env[0:3]) into rows 0..2 so the kernel needs no concat.
    m1_full = conv_mat(p["c1_w"], 11, 11)                      # (11, 22)
    m1 = m1_full[0:8].copy()
    m1[0:3] += m1_full[8:11]
    slab[R_M1:R_M1 + 8, 0:22] = m1
    slab[R_BIAS, 0:22] = np.repeat(p["c1_b"], 11)

    # conv2 reads the p1 lane layout (stride 11), conv3 reads p2 (stride 9).
    slab[R_M2:R_M2 + 20, 0:36] = conv_mat(p["c2_w"], 9, 11)    # (20, 36)
    slab[R_BIAS + 1, 0:36] = np.repeat(p["c2_b"], 9)
    slab[R_M3:R_M3 + 34, 0:56] = conv_mat(p["c3_w"], 7, 9)     # (34, 56)
    slab[R_BIAS + 2, 0:56] = np.repeat(p["c3_b"], 7)

    # fc1: rows laid out on the p3 lane layout (stride 7); torch Flatten order
    # of the (8, 5) tensor is c*5 + l.
    w1 = np.zeros((54, 20), np.float32)
    for c in range(8):
        for l in range(5):
            w1[c * 7 + l, :] = p["fc1_w"][:, c * 5 + l]
    slab[R_FC1:R_FC1 + 54, 0:20] = w1
    slab[R_BIAS + 3, 0:20] = p["fc1_b"]

    slab[R_FC2:R_FC2 + 20, 0:16] = p["fc2_w"].T
    slab[R_BIAS + 4, 0:16] = p["fc2_b"]

    slab[R_WIH:R_WIH + 16, 0:32] = p["w_ih"].T
    slab[R_WHH:R_WHH + 8, 0:32] = p["w_hh"].T
    slab[R_BIAS + 5, 0:32] = p["b_ih"] + p["b_hh"]
    return jnp.asarray(slab)


# ---------------------------------------------------------------------------
# Hot-path wrapper: one pallas_call per rollout; state input aliases the
# state output.  (For batched agents on v7x, add a leading batch grid axis
# with dimension_semantics=("parallel", ...) to use the second TensorCore.)
# ---------------------------------------------------------------------------
@jax.jit
def lstm_rollout(env_seq, slab, state):
    """Run T recurrent steps in one kernel.

    env_seq : (T, 8) environment observations.
    state   : (2, 8) [hx; cx] initial recurrent state.
    Returns (h_seq (T, 8) = q_table per step, new (2, 8) state)."""
    T = env_seq.shape[0]
    vmem = pl.BlockSpec(memory_space=pltpu.MemorySpace.VMEM)
    return pl.pallas_call(
        lstm_dqn_kernel,
        out_shape=(jax.ShapeDtypeStruct((T, 8), jnp.float32),
                   jax.ShapeDtypeStruct((2, 8), jnp.float32)),
        in_specs=[vmem, vmem, vmem],
        out_specs=(vmem, vmem),
        input_output_aliases={2: 1},     # state in -> state out
    )(env_seq.astype(jnp.float32), slab, state)


# ---------------------------------------------------------------------------
# Deterministic parameter init (PyTorch-style uniform bounds, synthetic)
# ---------------------------------------------------------------------------
def init_params(key):
    ks = jax.random.split(key, 14)

    def u(k, shape, fan_in):
        bound = 1.0 / np.sqrt(fan_in)
        return jax.random.uniform(k, shape, jnp.float32, -bound, bound)

    return {
        "c1_w": u(ks[0], (2, 1, 3), 3),   "c1_b": u(ks[1], (2,), 3),
        "c2_w": u(ks[2], (4, 2, 3), 6),   "c2_b": u(ks[3], (4,), 6),
        "c3_w": u(ks[4], (8, 4, 3), 12),  "c3_b": u(ks[5], (8,), 12),
        "fc1_w": u(ks[6], (20, 40), 40),  "fc1_b": u(ks[7], (20,), 40),
        "fc2_w": u(ks[8], (16, 20), 20),  "fc2_b": u(ks[9], (16,), 20),
        "w_ih": u(ks[10], (32, 16), 8),   "w_hh": u(ks[11], (32, 8), 8),
        "b_ih": u(ks[12], (32,), 8),      "b_hh": u(ks[13], (32,), 8),
    }


# ---------------------------------------------------------------------------
# Independent NumPy reference (mirrors the PyTorch forward exactly)
# ---------------------------------------------------------------------------
def reference_forward(env_info, params, hx, cx):
    p = {k: np.asarray(v, np.float32) for k, v in params.items()}
    e = np.asarray(env_info, np.float32)
    x = np.concatenate([e, e[:3]])[None, :]                       # (1, 11)

    def conv(x, w, b):
        cin, L = x.shape
        cout = w.shape[0]
        xp = np.zeros((cin, L + 2), np.float32)
        xp[:, 1:L + 1] = x
        out = np.zeros((cout, L), np.float32)
        for o in range(cout):
            for t in range(L):
                out[o, t] = b[o] + np.sum(w[o] * xp[:, t:t + 3])
        return out

    def pool(x):
        L = x.shape[1]
        return np.stack([x[:, t:t + 3].max(axis=1) for t in range(L - 2)], axis=1)

    relu = lambda a: np.maximum(a, 0.0)
    sig = lambda a: 1.0 / (1.0 + np.exp(-a))

    t = pool(conv(x, p["c1_w"], p["c1_b"]))
    t = relu(pool(conv(t, p["c2_w"], p["c2_b"])))
    t = relu(pool(conv(t, p["c3_w"], p["c3_b"])))
    flat = t.reshape(1, -1)                                        # (1, 40)
    y = relu(flat @ p["fc1_w"].T + p["fc1_b"])
    z = relu(y @ p["fc2_w"].T + p["fc2_b"])
    gates = z @ p["w_ih"].T + p["b_ih"] + np.asarray(hx) @ p["w_hh"].T + p["b_hh"]
    i_g, f_g = sig(gates[:, 0:8]), sig(gates[:, 8:16])
    g_g, o_g = np.tanh(gates[:, 16:24]), sig(gates[:, 24:32])
    c_new = f_g * np.asarray(cx) + i_g * g_g
    h_new = o_g * np.tanh(c_new)
    return h_new, c_new


if __name__ == "__main__":
    key = jax.random.PRNGKey(0)
    k_env, k_par = jax.random.split(key)

    # fc_layer1 expects 8*(L-3) == 40 flattened features => env_info length 8.
    # Run an 8-step rollout so the recurrent (w_hh / cx) path is exercised.
    T = 8
    env_seq = jax.random.normal(k_env, (T, 8), jnp.float32)
    params = init_params(k_par)
    slab = pack_params(params)                    # one-time parameter prep

    state0 = jnp.zeros((2, 8), jnp.float32)       # rows: hx, cx (module init: zeros)
    h_seq, state = lstm_rollout(env_seq, slab, state0)
    jax.block_until_ready((h_seq, state))

    # NumPy reference rollout
    hx_ref = np.zeros((1, 8), np.float32)
    cx_ref = np.zeros((1, 8), np.float32)
    env_np = np.asarray(env_seq)
    h_ref = []
    for t in range(T):
        hx_ref, cx_ref = reference_forward(env_np[t], params, hx_ref, cx_ref)
        h_ref.append(hx_ref[0])
    h_ref = np.stack(h_ref, axis=0)

    np.testing.assert_allclose(np.asarray(h_seq), h_ref, rtol=1e-4, atol=1e-4)
    np.testing.assert_allclose(np.asarray(state[0:1]), hx_ref, rtol=1e-4, atol=1e-4)
    np.testing.assert_allclose(np.asarray(state[1:2]), cx_ref, rtol=1e-4, atol=1e-4)

    print("KERNEL_OK")
</pallas_src>

<mosaic_0001>
module attributes {stable_mosaic.version = 11 : i64} {
  func.func @lstm_dqn_kernel(%arg0: memref<8x8xf32, #tpu.memory_space<vmem>>, %arg1: memref<184x64xf32, #tpu.memory_space<vmem>>, %arg2: memref<2x8xf32, #tpu.memory_space<vmem>>, %arg3: memref<8x8xf32, #tpu.memory_space<vmem>>, %arg4: memref<2x8xf32, #tpu.memory_space<vmem>>) attributes {dimension_semantics = [], scalar_prefetch = 0 : i64, scratch_operands = 0 : i64, tpu.core_type = #tpu.core_type<tc>} {
    %c0 = arith.constant 0 : index
    %c0_0 = arith.constant 0 : index
    %0 = vector.load %arg0[%c0, %c0_0] : memref<8x8xf32, #tpu.memory_space<vmem>>, vector<8x8xf32>
    %c0_1 = arith.constant 0 : index
    %c0_2 = arith.constant 0 : index
    %1 = vector.load %arg1[%c0_1, %c0_2] : memref<184x64xf32, #tpu.memory_space<vmem>>, vector<8x22xf32>
    %cst = arith.constant dense<0.000000e+00> : vector<8x22xf32>
    %2 = tpu.matmul %0, %1, %cst {dimension_numbers = #tpu.dot_dimension_numbers<[1], [0], [0], [1], [0, 0, 1, 1], [], []>} : vector<8x8xf32>, vector<8x22xf32>, vector<8x22xf32> -> vector<8x22xf32>
    %c176 = arith.constant 176 : index
    %c0_3 = arith.constant 0 : index
    %3 = vector.load %arg1[%c176, %c0_3] : memref<184x64xf32, #tpu.memory_space<vmem>>, vector<1x22xf32>
    %4 = vector.broadcast %3 : vector<1x22xf32> to vector<8x22xf32>
    %5 = arith.addf %2, %4 : vector<8x22xf32>
    %6 = vector.extract_strided_slice %5 {offsets = [0, 0], sizes = [8, 20], strides = [1, 1]} : vector<8x22xf32> to vector<8x20xf32>
    %7 = vector.extract_strided_slice %5 {offsets = [0, 1], sizes = [8, 20], strides = [1, 1]} : vector<8x22xf32> to vector<8x20xf32>
    %8 = arith.maximumf %6, %7 : vector<8x20xf32>
    %9 = vector.extract_strided_slice %5 {offsets = [0, 2], sizes = [8, 20], strides = [1, 1]} : vector<8x22xf32> to vector<8x20xf32>
    %10 = arith.maximumf %8, %9 : vector<8x20xf32>
    %c8 = arith.constant 8 : index
    %c0_4 = arith.constant 0 : index
    %11 = vector.load %arg1[%c8, %c0_4] : memref<184x64xf32, #tpu.memory_space<vmem>>, vector<20x36xf32>
    %cst_5 = arith.constant dense<0.000000e+00> : vector<8x36xf32>
    %12 = tpu.matmul %10, %11, %cst_5 {dimension_numbers = #tpu.dot_dimension_numbers<[1], [0], [0], [1], [0, 0, 1, 1], [], []>} : vector<8x20xf32>, vector<20x36xf32>, vector<8x36xf32> -> vector<8x36xf32>
    %c177 = arith.constant 177 : index
    %c0_6 = arith.constant 0 : index
    %13 = vector.load %arg1[%c177, %c0_6] : memref<184x64xf32, #tpu.memory_space<vmem>>, vector<1x36xf32>
    %14 = vector.broadcast %13 : vector<1x36xf32> to vector<8x36xf32>
    %15 = arith.addf %12, %14 : vector<8x36xf32>
    %16 = vector.extract_strided_slice %15 {offsets = [0, 0], sizes = [8, 34], strides = [1, 1]} : vector<8x36xf32> to vector<8x34xf32>
    %17 = vector.extract_strided_slice %15 {offsets = [0, 1], sizes = [8, 34], strides = [1, 1]} : vector<8x36xf32> to vector<8x34xf32>
    %18 = arith.maximumf %16, %17 : vector<8x34xf32>
    %19 = vector.extract_strided_slice %15 {offsets = [0, 2], sizes = [8, 34], strides = [1, 1]} : vector<8x36xf32> to vector<8x34xf32>
    %20 = arith.maximumf %18, %19 : vector<8x34xf32>
    %cst_7 = arith.constant 0.000000e+00 : f32
    %21 = vector.broadcast %cst_7 : f32 to vector<8x34xf32>
    %22 = arith.maximumf %20, %21 : vector<8x34xf32>
    %c32 = arith.constant 32 : index
    %c0_8 = arith.constant 0 : index
    %23 = vector.load %arg1[%c32, %c0_8] : memref<184x64xf32, #tpu.memory_space<vmem>>, vector<34x56xf32>
    %cst_9 = arith.constant dense<0.000000e+00> : vector<8x56xf32>
    %24 = tpu.matmul %22, %23, %cst_9 {dimension_numbers = #tpu.dot_dimension_numbers<[1], [0], [0], [1], [0, 0, 1, 1], [], []>} : vector<8x34xf32>, vector<34x56xf32>, vector<8x56xf32> -> vector<8x56xf32>
    %c178 = arith.constant 178 : index
    %c0_10 = arith.constant 0 : index
    %25 = vector.load %arg1[%c178, %c0_10] : memref<184x64xf32, #tpu.memory_space<vmem>>, vector<1x56xf32>
    %26 = vector.broadcast %25 : vector<1x56xf32> to vector<8x56xf32>
    %27 = arith.addf %24, %26 : vector<8x56xf32>
    %28 = vector.extract_strided_slice %27 {offsets = [0, 0], sizes = [8, 54], strides = [1, 1]} : vector<8x56xf32> to vector<8x54xf32>
    %29 = vector.extract_strided_slice %27 {offsets = [0, 1], sizes = [8, 54], strides = [1, 1]} : vector<8x56xf32> to vector<8x54xf32>
    %30 = arith.maximumf %28, %29 : vector<8x54xf32>
    %31 = vector.extract_strided_slice %27 {offsets = [0, 2], sizes = [8, 54], strides = [1, 1]} : vector<8x56xf32> to vector<8x54xf32>
    %32 = arith.maximumf %30, %31 : vector<8x54xf32>
    %cst_11 = arith.constant 0.000000e+00 : f32
    %33 = vector.broadcast %cst_11 : f32 to vector<8x54xf32>
    %34 = arith.maximumf %32, %33 : vector<8x54xf32>
    %c72 = arith.constant 72 : index
    %c0_12 = arith.constant 0 : index
    %35 = vector.load %arg1[%c72, %c0_12] : memref<184x64xf32, #tpu.memory_space<vmem>>, vector<54x20xf32>
    %cst_13 = arith.constant dense<0.000000e+00> : vector<8x20xf32>
    %36 = tpu.matmul %34, %35, %cst_13 {dimension_numbers = #tpu.dot_dimension_numbers<[1], [0], [0], [1], [0, 0, 1, 1], [], []>} : vector<8x54xf32>, vector<54x20xf32>, vector<8x20xf32> -> vector<8x20xf32>
    %c179 = arith.constant 179 : index
    %c0_14 = arith.constant 0 : index
    %37 = vector.load %arg1[%c179, %c0_14] : memref<184x64xf32, #tpu.memory_space<vmem>>, vector<1x20xf32>
    %38 = vector.broadcast %37 : vector<1x20xf32> to vector<8x20xf32>
    %39 = arith.addf %36, %38 : vector<8x20xf32>
    %cst_15 = arith.constant 0.000000e+00 : f32
    %40 = vector.broadcast %cst_15 : f32 to vector<8x20xf32>
    %41 = arith.maximumf %39, %40 : vector<8x20xf32>
    %c128 = arith.constant 128 : index
    %c0_16 = arith.constant 0 : index
    %42 = vector.load %arg1[%c128, %c0_16] : memref<184x64xf32, #tpu.memory_space<vmem>>, vector<20x16xf32>
    %cst_17 = arith.constant dense<0.000000e+00> : vector<8x16xf32>
    %43 = tpu.matmul %41, %42, %cst_17 {dimension_numbers = #tpu.dot_dimension_numbers<[1], [0], [0], [1], [0, 0, 1, 1], [], []>} : vector<8x20xf32>, vector<20x16xf32>, vector<8x16xf32> -> vector<8x16xf32>
    %c180 = arith.constant 180 : index
    %c0_18 = arith.constant 0 : index
    %44 = vector.load %arg1[%c180, %c0_18] : memref<184x64xf32, #tpu.memory_space<vmem>>, vector<1x16xf32>
    %45 = vector.broadcast %44 : vector<1x16xf32> to vector<8x16xf32>
    %46 = arith.addf %43, %45 : vector<8x16xf32>
    %cst_19 = arith.constant 0.000000e+00 : f32
    %47 = vector.broadcast %cst_19 : f32 to vector<8x16xf32>
    %48 = arith.maximumf %46, %47 : vector<8x16xf32>
    %c152 = arith.constant 152 : index
    %c0_20 = arith.constant 0 : index
    %49 = vector.load %arg1[%c152, %c0_20] : memref<184x64xf32, #tpu.memory_space<vmem>>, vector<16x32xf32>
    %cst_21 = arith.constant dense<0.000000e+00> : vector<8x32xf32>
    %50 = tpu.matmul %48, %49, %cst_21 {dimension_numbers = #tpu.dot_dimension_numbers<[1], [0], [0], [1], [0, 0, 1, 1], [], []>} : vector<8x16xf32>, vector<16x32xf32>, vector<8x32xf32> -> vector<8x32xf32>
    %c181 = arith.constant 181 : index
    %c0_22 = arith.constant 0 : index
    %51 = vector.load %arg1[%c181, %c0_22] : memref<184x64xf32, #tpu.memory_space<vmem>>, vector<1x32xf32>
    %52 = vector.broadcast %51 : vector<1x32xf32> to vector<8x32xf32>
    %53 = arith.addf %50, %52 : vector<8x32xf32>
    %c168 = arith.constant 168 : index
    %c0_23 = arith.constant 0 : index
    %54 = vector.load %arg1[%c168, %c0_23] : memref<184x64xf32, #tpu.memory_space<vmem>>, vector<8x32xf32>
    %55 = tpu.iota {dimensions = array<i32: 1>} : vector<1x32xi32>
    %c16_i32 = arith.constant 16 : i32
    %56 = vector.broadcast %c16_i32 : i32 to vector<1x32xi32>
    %57 = arith.cmpi sge, %55, %56 : vector<1x32xi32>
    %c24_i32 = arith.constant 24 : i32
    %58 = vector.broadcast %c24_i32 : i32 to vector<1x32xi32>
    %59 = arith.cmpi slt, %55, %58 : vector<1x32xi32>
    %60 = arith.andi %57, %59 : vector<1x32xi1>
    %cst_24 = arith.constant 1.000000e+00 : f32
    %cst_25 = arith.constant 5.000000e-01 : f32
    %61 = vector.broadcast %cst_24 : f32 to vector<1x32xf32>
    %62 = vector.broadcast %cst_25 : f32 to vector<1x32xf32>
    %63 = arith.select %60, %61, %62 : vector<1x32xi1>, vector<1x32xf32>
    %cst_26 = arith.constant 0.000000e+00 : f32
    %cst_27 = arith.constant 5.000000e-01 : f32
    %64 = vector.broadcast %cst_26 : f32 to vector<1x32xf32>
    %65 = vector.broadcast %cst_27 : f32 to vector<1x32xf32>
    %66 = arith.select %60, %64, %65 : vector<1x32xi1>, vector<1x32xf32>
    %c0_28 = arith.constant 0 : index
    %c0_29 = arith.constant 0 : index
    %67 = vector.load %arg2[%c0_28, %c0_29] : memref<2x8xf32, #tpu.memory_space<vmem>>, vector<1x8xf32>
    %c1 = arith.constant 1 : index
    %c0_30 = arith.constant 0 : index
    %68 = vector.load %arg2[%c1, %c0_30] : memref<2x8xf32, #tpu.memory_space<vmem>>, vector<1x8xf32>
    %69 = vector.extract_strided_slice %53 {offsets = [0, 0], sizes = [1, 32], strides = [1, 1]} : vector<8x32xf32> to vector<1x32xf32>
    %cst_31 = arith.constant dense<0.000000e+00> : vector<1x32xf32>
    %70 = tpu.matmul %67, %54, %cst_31 {dimension_numbers = #tpu.dot_dimension_numbers<[1], [0], [0], [1], [0, 0, 1, 1], [], []>} : vector<1x8xf32>, vector<8x32xf32>, vector<1x32xf32> -> vector<1x32xf32>
    %71 = arith.addf %69, %70 : vector<1x32xf32>
    %72 = arith.mulf %71, %63 : vector<1x32xf32>
    %73 = math.tanh %72 : vector<1x32xf32>
    %74 = arith.mulf %73, %63 : vector<1x32xf32>
    %75 = arith.addf %74, %66 : vector<1x32xf32>
    %76 = vector.extract_strided_slice %75 {offsets = [0, 0], sizes = [1, 8], strides = [1, 1]} : vector<1x32xf32> to vector<1x8xf32>
    %77 = vector.extract_strided_slice %75 {offsets = [0, 8], sizes = [1, 8], strides = [1, 1]} : vector<1x32xf32> to vector<1x8xf32>
    %78 = vector.extract_strided_slice %75 {offsets = [0, 16], sizes = [1, 8], strides = [1, 1]} : vector<1x32xf32> to vector<1x8xf32>
    %79 = vector.extract_strided_slice %75 {offsets = [0, 24], sizes = [1, 8], strides = [1, 1]} : vector<1x32xf32> to vector<1x8xf32>
    %80 = arith.mulf %77, %68 : vector<1x8xf32>
    %81 = arith.mulf %76, %78 : vector<1x8xf32>
    %82 = arith.addf %80, %81 : vector<1x8xf32>
    %83 = math.tanh %82 : vector<1x8xf32>
    %84 = arith.mulf %79, %83 : vector<1x8xf32>
    %c0_32 = arith.constant 0 : index
    %c0_33 = arith.constant 0 : index
    %85 = vector.load %arg3[%c0_32, %c0_33] : memref<8x8xf32, #tpu.memory_space<vmem>>, vector<1x8xf32>
    tpu.vector_store %arg3[%c0_32, %c0_33], %84 {strides = array<i32>} : memref<8x8xf32, #tpu.memory_space<vmem>>, vector<1x8xf32>,
    %86 = vector.extract_strided_slice %53 {offsets = [1, 0], sizes = [1, 32], strides = [1, 1]} : vector<8x32xf32> to vector<1x32xf32>
    %cst_34 = arith.constant dense<0.000000e+00> : vector<1x32xf32>
    %87 = tpu.matmul %84, %54, %cst_34 {dimension_numbers = #tpu.dot_dimension_numbers<[1], [0], [0], [1], [0, 0, 1, 1], [], []>} : vector<1x8xf32>, vector<8x32xf32>, vector<1x32xf32> -> vector<1x32xf32>
    %88 = arith.addf %86, %87 : vector<1x32xf32>
    %89 = arith.mulf %88, %63 : vector<1x32xf32>
    %90 = math.tanh %89 : vector<1x32xf32>
    %91 = arith.mulf %90, %63 : vector<1x32xf32>
    %92 = arith.addf %91, %66 : vector<1x32xf32>
    %93 = vector.extract_strided_slice %92 {offsets = [0, 0], sizes = [1, 8], strides = [1, 1]} : vector<1x32xf32> to vector<1x8xf32>
    %94 = vector.extract_strided_slice %92 {offsets = [0, 8], sizes = [1, 8], strides = [1, 1]} : vector<1x32xf32> to vector<1x8xf32>
    %95 = vector.extract_strided_slice %92 {offsets = [0, 16], sizes = [1, 8], strides = [1, 1]} : vector<1x32xf32> to vector<1x8xf32>
    %96 = vector.extract_strided_slice %92 {offsets = [0, 24], sizes = [1, 8], strides = [1, 1]} : vector<1x32xf32> to vector<1x8xf32>
    %97 = arith.mulf %94, %82 : vector<1x8xf32>
    %98 = arith.mulf %93, %95 : vector<1x8xf32>
    %99 = arith.addf %97, %98 : vector<1x8xf32>
    %100 = math.tanh %99 : vector<1x8xf32>
    %101 = arith.mulf %96, %100 : vector<1x8xf32>
    %c1_35 = arith.constant 1 : index
    %c0_36 = arith.constant 0 : index
    %102 = vector.load %arg3[%c1_35, %c0_36] : memref<8x8xf32, #tpu.memory_space<vmem>>, vector<1x8xf32>
    tpu.vector_store %arg3[%c1_35, %c0_36], %101 {strides = array<i32>} : memref<8x8xf32, #tpu.memory_space<vmem>>, vector<1x8xf32>,
    %103 = vector.extract_strided_slice %53 {offsets = [2, 0], sizes = [1, 32], strides = [1, 1]} : vector<8x32xf32> to vector<1x32xf32>
    %cst_37 = arith.constant dense<0.000000e+00> : vector<1x32xf32>
    %104 = tpu.matmul %101, %54, %cst_37 {dimension_numbers = #tpu.dot_dimension_numbers<[1], [0], [0], [1], [0, 0, 1, 1], [], []>} : vector<1x8xf32>, vector<8x32xf32>, vector<1x32xf32> -> vector<1x32xf32>
    %105 = arith.addf %103, %104 : vector<1x32xf32>
    %106 = arith.mulf %105, %63 : vector<1x32xf32>
    %107 = math.tanh %106 : vector<1x32xf32>
    %108 = arith.mulf %107, %63 : vector<1x32xf32>
    %109 = arith.addf %108, %66 : vector<1x32xf32>
    %110 = vector.extract_strided_slice %109 {offsets = [0, 0], sizes = [1, 8], strides = [1, 1]} : vector<1x32xf32> to vector<1x8xf32>
    %111 = vector.extract_strided_slice %109 {offsets = [0, 8], sizes = [1, 8], strides = [1, 1]} : vector<1x32xf32> to vector<1x8xf32>
    %112 = vector.extract_strided_slice %109 {offsets = [0, 16], sizes = [1, 8], strides = [1, 1]} : vector<1x32xf32> to vector<1x8xf32>
    %113 = vector.extract_strided_slice %109 {offsets = [0, 24], sizes = [1, 8], strides = [1, 1]} : vector<1x32xf32> to vector<1x8xf32>
    %114 = arith.mulf %111, %99 : vector<1x8xf32>
    %115 = arith.mulf %110, %112 : vector<1x8xf32>
    %116 = arith.addf %114, %115 : vector<1x8xf32>
    %117 = math.tanh %116 : vector<1x8xf32>
    %118 = arith.mulf %113, %117 : vector<1x8xf32>
    %c2 = arith.constant 2 : index
    %c0_38 = arith.constant 0 : index
    %119 = vector.load %arg3[%c2, %c0_38] : memref<8x8xf32, #tpu.memory_space<vmem>>, vector<1x8xf32>
    tpu.vector_store %arg3[%c2, %c0_38], %118 {strides = array<i32>} : memref<8x8xf32, #tpu.memory_space<vmem>>, vector<1x8xf32>,
    %120 = vector.extract_strided_slice %53 {offsets = [3, 0], sizes = [1, 32], strides = [1, 1]} : vector<8x32xf32> to vector<1x32xf32>
    %cst_39 = arith.constant dense<0.000000e+00> : vector<1x32xf32>
    %121 = tpu.matmul %118, %54, %cst_39 {dimension_numbers = #tpu.dot_dimension_numbers<[1], [0], [0], [1], [0, 0, 1, 1], [], []>} : vector<1x8xf32>, vector<8x32xf32>, vector<1x32xf32> -> vector<1x32xf32>
    %122 = arith.addf %120, %121 : vector<1x32xf32>
    %123 = arith.mulf %122, %63 : vector<1x32xf32>
    %124 = math.tanh %123 : vector<1x32xf32>
    %125 = arith.mulf %124, %63 : vector<1x32xf32>
    %126 = arith.addf %125, %66 : vector<1x32xf32>
    %127 = vector.extract_strided_slice %126 {offsets = [0, 0], sizes = [1, 8], strides = [1, 1]} : vector<1x32xf32> to vector<1x8xf32>
    %128 = vector.extract_strided_slice %126 {offsets = [0, 8], sizes = [1, 8], strides = [1, 1]} : vector<1x32xf32> to vector<1x8xf32>
    %129 = vector.extract_strided_slice %126 {offsets = [0, 16], sizes = [1, 8], strides = [1, 1]} : vector<1x32xf32> to vector<1x8xf32>
    %130 = vector.extract_strided_slice %126 {offsets = [0, 24], sizes = [1, 8], strides = [1, 1]} : vector<1x32xf32> to vector<1x8xf32>
    %131 = arith.mulf %128, %116 : vector<1x8xf32>
    %132 = arith.mulf %127, %129 : vector<1x8xf32>
    %133 = arith.addf %131, %132 : vector<1x8xf32>
    %134 = math.tanh %133 : vector<1x8xf32>
    %135 = arith.mulf %130, %134 : vector<1x8xf32>
    %c3 = arith.constant 3 : index
    %c0_40 = arith.constant 0 : index
    %136 = vector.load %arg3[%c3, %c0_40] : memref<8x8xf32, #tpu.memory_space<vmem>>, vector<1x8xf32>
    tpu.vector_store %arg3[%c3, %c0_40], %135 {strides = array<i32>} : memref<8x8xf32, #tpu.memory_space<vmem>>, vector<1x8xf32>,
    %137 = vector.extract_strided_slice %53 {offsets = [4, 0], sizes = [1, 32], strides = [1, 1]} : vector<8x32xf32> to vector<1x32xf32>
    %cst_41 = arith.constant dense<0.000000e+00> : vector<1x32xf32>
    %138 = tpu.matmul %135, %54, %cst_41 {dimension_numbers = #tpu.dot_dimension_numbers<[1], [0], [0], [1], [0, 0, 1, 1], [], []>} : vector<1x8xf32>, vector<8x32xf32>, vector<1x32xf32> -> vector<1x32xf32>
    %139 = arith.addf %137, %138 : vector<1x32xf32>
    %140 = arith.mulf %139, %63 : vector<1x32xf32>
    %141 = math.tanh %140 : vector<1x32xf32>
    %142 = arith.mulf %141, %63 : vector<1x32xf32>
    %143 = arith.addf %142, %66 : vector<1x32xf32>
    %144 = vector.extract_strided_slice %143 {offsets = [0, 0], sizes = [1, 8], strides = [1, 1]} : vector<1x32xf32> to vector<1x8xf32>
    %145 = vector.extract_strided_slice %143 {offsets = [0, 8], sizes = [1, 8], strides = [1, 1]} : vector<1x32xf32> to vector<1x8xf32>
    %146 = vector.extract_strided_slice %143 {offsets = [0, 16], sizes = [1, 8], strides = [1, 1]} : vector<1x32xf32> to vector<1x8xf32>
    %147 = vector.extract_strided_slice %143 {offsets = [0, 24], sizes = [1, 8], strides = [1, 1]} : vector<1x32xf32> to vector<1x8xf32>
    %148 = arith.mulf %145, %133 : vector<1x8xf32>
    %149 = arith.mulf %144, %146 : vector<1x8xf32>
    %150 = arith.addf %148, %149 : vector<1x8xf32>
    %151 = math.tanh %150 : vector<1x8xf32>
    %152 = arith.mulf %147, %151 : vector<1x8xf32>
    %c4 = arith.constant 4 : index
    %c0_42 = arith.constant 0 : index
    %153 = vector.load %arg3[%c4, %c0_42] : memref<8x8xf32, #tpu.memory_space<vmem>>, vector<1x8xf32>
    tpu.vector_store %arg3[%c4, %c0_42], %152 {strides = array<i32>} : memref<8x8xf32, #tpu.memory_space<vmem>>, vector<1x8xf32>,
    %154 = vector.extract_strided_slice %53 {offsets = [5, 0], sizes = [1, 32], strides = [1, 1]} : vector<8x32xf32> to vector<1x32xf32>
    %cst_43 = arith.constant dense<0.000000e+00> : vector<1x32xf32>
    %155 = tpu.matmul %152, %54, %cst_43 {dimension_numbers = #tpu.dot_dimension_numbers<[1], [0], [0], [1], [0, 0, 1, 1], [], []>} : vector<1x8xf32>, vector<8x32xf32>, vector<1x32xf32> -> vector<1x32xf32>
    %156 = arith.addf %154, %155 : vector<1x32xf32>
    %157 = arith.mulf %156, %63 : vector<1x32xf32>
    %158 = math.tanh %157 : vector<1x32xf32>
    %159 = arith.mulf %158, %63 : vector<1x32xf32>
    %160 = arith.addf %159, %66 : vector<1x32xf32>
    %161 = vector.extract_strided_slice %160 {offsets = [0, 0], sizes = [1, 8], strides = [1, 1]} : vector<1x32xf32> to vector<1x8xf32>
    %162 = vector.extract_strided_slice %160 {offsets = [0, 8], sizes = [1, 8], strides = [1, 1]} : vector<1x32xf32> to vector<1x8xf32>
    %163 = vector.extract_strided_slice %160 {offsets = [0, 16], sizes = [1, 8], strides = [1, 1]} : vector<1x32xf32> to vector<1x8xf32>
    %164 = vector.extract_strided_slice %160 {offsets = [0, 24], sizes = [1, 8], strides = [1, 1]} : vector<1x32xf32> to vector<1x8xf32>
    %165 = arith.mulf %162, %150 : vector<1x8xf32>
    %166 = arith.mulf %161, %163 : vector<1x8xf32>
    %167 = arith.addf %165, %166 : vector<1x8xf32>
    %168 = math.tanh %167 : vector<1x8xf32>
    %169 = arith.mulf %164, %168 : vector<1x8xf32>
    %c5 = arith.constant 5 : index
    %c0_44 = arith.constant 0 : index
    %170 = vector.load %arg3[%c5, %c0_44] : memref<8x8xf32, #tpu.memory_space<vmem>>, vector<1x8xf32>
    tpu.vector_store %arg3[%c5, %c0_44], %169 {strides = array<i32>} : memref<8x8xf32, #tpu.memory_space<vmem>>, vector<1x8xf32>,
    %171 = vector.extract_strided_slice %53 {offsets = [6, 0], sizes = [1, 32], strides = [1, 1]} : vector<8x32xf32> to vector<1x32xf32>
    %cst_45 = arith.constant dense<0.000000e+00> : vector<1x32xf32>
    %172 = tpu.matmul %169, %54, %cst_45 {dimension_numbers = #tpu.dot_dimension_numbers<[1], [0], [0], [1], [0, 0, 1, 1], [], []>} : vector<1x8xf32>, vector<8x32xf32>, vector<1x32xf32> -> vector<1x32xf32>
    %173 = arith.addf %171, %172 : vector<1x32xf32>
    %174 = arith.mulf %173, %63 : vector<1x32xf32>
    %175 = math.tanh %174 : vector<1x32xf32>
    %176 = arith.mulf %175, %63 : vector<1x32xf32>
    %177 = arith.addf %176, %66 : vector<1x32xf32>
    %178 = vector.extract_strided_slice %177 {offsets = [0, 0], sizes = [1, 8], strides = [1, 1]} : vector<1x32xf32> to vector<1x8xf32>
    %179 = vector.extract_strided_slice %177 {offsets = [0, 8], sizes = [1, 8], strides = [1, 1]} : vector<1x32xf32> to vector<1x8xf32>
    %180 = vector.extract_strided_slice %177 {offsets = [0, 16], sizes = [1, 8], strides = [1, 1]} : vector<1x32xf32> to vector<1x8xf32>
    %181 = vector.extract_strided_slice %177 {offsets = [0, 24], sizes = [1, 8], strides = [1, 1]} : vector<1x32xf32> to vector<1x8xf32>
    %182 = arith.mulf %179, %167 : vector<1x8xf32>
    %183 = arith.mulf %178, %180 : vector<1x8xf32>
    %184 = arith.addf %182, %183 : vector<1x8xf32>
    %185 = math.tanh %184 : vector<1x8xf32>
    %186 = arith.mulf %181, %185 : vector<1x8xf32>
    %c6 = arith.constant 6 : index
    %c0_46 = arith.constant 0 : index
    %187 = vector.load %arg3[%c6, %c0_46] : memref<8x8xf32, #tpu.memory_space<vmem>>, vector<1x8xf32>
    tpu.vector_store %arg3[%c6, %c0_46], %186 {strides = array<i32>} : memref<8x8xf32, #tpu.memory_space<vmem>>, vector<1x8xf32>,
    %188 = vector.extract_strided_slice %53 {offsets = [7, 0], sizes = [1, 32], strides = [1, 1]} : vector<8x32xf32> to vector<1x32xf32>
    %cst_47 = arith.constant dense<0.000000e+00> : vector<1x32xf32>
    %189 = tpu.matmul %186, %54, %cst_47 {dimension_numbers = #tpu.dot_dimension_numbers<[1], [0], [0], [1], [0, 0, 1, 1], [], []>} : vector<1x8xf32>, vector<8x32xf32>, vector<1x32xf32> -> vector<1x32xf32>
    %190 = arith.addf %188, %189 : vector<1x32xf32>
    %191 = arith.mulf %190, %63 : vector<1x32xf32>
    %192 = math.tanh %191 : vector<1x32xf32>
    %193 = arith.mulf %192, %63 : vector<1x32xf32>
    %194 = arith.addf %193, %66 : vector<1x32xf32>
    %195 = vector.extract_strided_slice %194 {offsets = [0, 0], sizes = [1, 8], strides = [1, 1]} : vector<1x32xf32> to vector<1x8xf32>
    %196 = vector.extract_strided_slice %194 {offsets = [0, 8], sizes = [1, 8], strides = [1, 1]} : vector<1x32xf32> to vector<1x8xf32>
    %197 = vector.extract_strided_slice %194 {offsets = [0, 16], sizes = [1, 8], strides = [1, 1]} : vector<1x32xf32> to vector<1x8xf32>
    %198 = vector.extract_strided_slice %194 {offsets = [0, 24], sizes = [1, 8], strides = [1, 1]} : vector<1x32xf32> to vector<1x8xf32>
    %199 = arith.mulf %196, %184 : vector<1x8xf32>
    %200 = arith.mulf %195, %197 : vector<1x8xf32>
    %201 = arith.addf %199, %200 : vector<1x8xf32>
    %202 = math.tanh %201 : vector<1x8xf32>
    %203 = arith.mulf %198, %202 : vector<1x8xf32>
    %c7 = arith.constant 7 : index
    %c0_48 = arith.constant 0 : index
    %204 = vector.load %arg3[%c7, %c0_48] : memref<8x8xf32, #tpu.memory_space<vmem>>, vector<1x8xf32>
    tpu.vector_store %arg3[%c7, %c0_48], %203 {strides = array<i32>} : memref<8x8xf32, #tpu.memory_space<vmem>>, vector<1x8xf32>,
    %c0_49 = arith.constant 0 : index
    %c0_50 = arith.constant 0 : index
    %205 = vector.load %arg4[%c0_49, %c0_50] : memref<2x8xf32, #tpu.memory_space<vmem>>, vector<1x8xf32>
    tpu.vector_store %arg4[%c0_49, %c0_50], %203 {strides = array<i32>} : memref<2x8xf32, #tpu.memory_space<vmem>>, vector<1x8xf32>,
    %c1_51 = arith.constant 1 : index
    %c0_52 = arith.constant 0 : index
    %206 = vector.load %arg4[%c1_51, %c0_52] : memref<2x8xf32, #tpu.memory_space<vmem>>, vector<1x8xf32>
    tpu.vector_store %arg4[%c1_51, %c0_52], %201 {strides = array<i32>} : memref<2x8xf32, #tpu.memory_space<vmem>>, vector<1x8xf32>,
    return
  }
}

</mosaic_0001>

<llo_original>
// kernel: lstm_rollout.1
$region0: #{lstm_rollout.1}
  #allocation0 [shape = 'u32[]', space=smem, size = 0x4, offset = 0x4, fixed_abs, tag = 'smem constant byte address 0x4 - core index']
  #allocation1 [shape = 'u32[72,128]{1,0:T(1,128)}', space=vmem, size = 0x9000, scoped, tag = 'internal scratch']
  %s0 = inlined_call_operand.vmem [shape: f32[8,8], index: 0, kind: input, shape index: {}]
  %s1 = inlined_call_operand.vmem [shape: f32[184,64], index: 1, kind: input, shape index: {}]
  %s2 = inlined_call_operand.hbm [shape: f32[2,8], index: 2, kind: input, shape index: {}, may-alias: {2,4}]
  %s3 = inlined_call_operand.hbm [shape: f32[8,8], index: 3, kind: output, shape index: {0}]
  %s4 = inlined_call_operand.hbm [shape: f32[2,8], index: 4, kind: output, shape index: {1}, may-alias: {2,4}]
  %5 = xla_tuple %s3, %s4
  %s6 = sld [smem:[#allocation0]]
  $region34: #{lstm_rollout.1} parent=0
    _
  %s8 = ssub.s32 1, %s6
  %s9 = scalar_select 0, %s8, %s6
  $region1: #{lstm_rollout.1} parent=0
    #allocation2 [shape = 'u8[1024]{0}', space=vmem, size = 0x400, scoped, tag = 'input window, operand 2, single buffered']
    #allocation3 [shape = 's32[1]{0}', space=sflag, size = 0x4, scoped, tag = 'scoped memory for lstm_rollout.1']
    #allocation4 [shape = 's32[1]{0}', space=sflag, size = 0x4, scoped, tag = 'scoped memory for lstm_rollout.1']
    #allocation5 [shape = 'u8[4096]{0}', space=vmem, size = 0x1000, scoped, tag = 'output window, operand 0, single buffered']
    #allocation6 [shape = 'u8[1024]{0}', space=vmem, size = 0x400, scoped, tag = 'output window, operand 1, single buffered']
    #allocation7 [shape = 's32[1]{0}', space=sflag, size = 0x4, scoped, tag = 'scoped memory for lstm_rollout.1']
    %10 = vsyncpa [#allocation3], 0
    %11 = vsyncpa [#allocation4], 0
    %12 = vsyncpa [#allocation7], 0
    // Predicated region
    $region2: #{lstm_rollout.1} parent=1 // pred_check
      _
    $region3: #{lstm_rollout.1} parent=1 // pred_check_branch
      %14 = sbr.rel (0) target = $region5
    $region4: #{lstm_rollout.1} parent=1 // pred_region
      _
    $region5: #{lstm_rollout.1} parent=1 // pred_fallthru
      _
    // Predicated region
    $region6: #{lstm_rollout.1} parent=1 // pred_check
      _
    $region7: #{lstm_rollout.1} parent=1 // pred_check_branch
      %16 = sbr.rel (0) target = $region9
    $region8: #{lstm_rollout.1} parent=1 // pred_region
      _
    $region9: #{lstm_rollout.1} parent=1 // pred_fallthru
      _
    // Predicated region
    $region10: #{lstm_rollout.1} parent=1 // pred_check
      _
    $region11: #{lstm_rollout.1} parent=1 // pred_check_branch
      %18 = sbr.rel (0) target = $region13
    $region12: #{lstm_rollout.1} parent=1 // pred_region
      %20 = vsyncadd [#allocation3], 0
      %s22 = sshll.u32 %s2, 4
      %s23 = int_to_ptr.hbm [resolvable:$true] %s22
      %s24 = sshll.u32 [#allocation2], 4
      %s25 = int_to_ptr.vmem [resolvable:$true] %s24
      %27 = dma.hbm_to_vmem [thread:$0]  %s23, 32, %s25, [#allocation3]
    $region13: #{lstm_rollout.1} parent=1 // pred_fallthru
      _
    // Predicated region
    $region14: #{lstm_rollout.1} parent=1 // pred_check
      _
    $region15: #{lstm_rollout.1} parent=1 // pred_check_branch
      %29 = sbr.rel (0) target = $region17
    $region16: #{lstm_rollout.1} parent=1 // pred_region
      %31 = dma.done [#allocation3], 32
    $region17: #{lstm_rollout.1} parent=1 // pred_fallthru
      _
    %v32 = vld [vmem:[%s0] sm:$0xff]
    %v33 = vld [vmem:[%s1] sm:$0xff]
    %v34 = vld [vmem:[%s1 + $0xb0] sm:$0x1]
    %v35 = vperm.slane %v34, 0
    %vm36 = vcmask 64512
    %v38 = vsel %vm36, %v32, 0
    %40 = vmatpush.msra.mxu0 0.0
    %41 = vmatpush.msra.mxu0 0.0
    %42 = vmatpush.msra.mxu0 0.0
    %43 = vmatpush.msra.mxu0 0.0
    %44 = vmatpush.msra.mxu0 0.0
    %45 = vmatpush.msra.mxu0 0.0
    %46 = vmatpush.msra.mxu0 0.0
    %47 = vmatpush.msra.mxu0 0.0
    %48 = vmatpush.msra.mxu0 0.0
    %49 = vmatpush.msra.mxu0 0.0
    %50 = vmatpush.msra.mxu0 0.0
    %51 = vmatpush.msra.mxu0 0.0
    %52 = vmatpush.msra.mxu0 0.0
    %53 = vmatpush.msra.mxu0 0.0
    %54 = vmatpush.msra.mxu0 0.0
    %55 = vmatpush.msra.mxu0 %v33
    %56 = vmatmul.f32.gmra.mxu0 %v38
    %v57 = vpop.f32.mrf.mxu0
    %v58 = vadd.f32 %v35, %v57
    %59 = vdwg.mxu0
    %61 = vrot.lane.b32.xlu0 %v58, 127
    %v62 = vpop.permute.xlu0 %61
    %v64 = vmax.f32 %v58, %v62
    %65 = vrot.lane.b32.xlu0 %v58, 126
    %v66 = vpop.permute.xlu0 %65
    %v68 = vmax.f32 %v64, %v66
    %v69 = vld [vmem:[%s1 + $0x8] sm:$0xff]
    %v70 = vld [vmem:[%s1 + $0x10] sm:$0xff]
    %v71 = vld [vmem:[%s1 + $0x18] sm:$0xf]
    %v72 = vld [vmem:[%s1 + $0xb1] sm:$0x1]
    %v73 = vperm.slane %v72, 0
    %vm74 = vcmask 162816
    %v76 = vsel %vm74, %v68, 0
    %vm78 = vcmask 1043456
    %v80 = vsel %vm78, %v71, 0
    %82 = vmatpush.msra.mxu0 0.0
    %83 = vmatpush.msra.mxu0 0.0
    %84 = vmatpush.msra.mxu0 0.0
    %85 = vmatpush.msra.mxu0 0.0
    %86 = vmatpush.msra.mxu0 0.0
    %87 = vmatpush.msra.mxu0 0.0
    %88 = vmatpush.msra.mxu0 0.0
    %89 = vmatpush.msra.mxu0 0.0
    %90 = vmatpush.msra.mxu0 0.0
    %91 = vmatpush.msra.mxu0 0.0
    %92 = vmatpush.msra.mxu0 0.0
    %93 = vmatpush.msra.mxu0 0.0
    %94 = vmatpush.msra.mxu0 0.0
    %95 = vmatpush.msra.mxu0 %v80
    %96 = vmatpush.msra.mxu0 %v70
    %97 = vmatpush.msra.mxu0 %v69
    %98 = vmatmul.f32.gmra.mxu0 %v76
    %v99 = vpop.f32.mrf.mxu0
    %v100 = vadd.f32 %v73, %v99
    %101 = vdwg.mxu0
    %103 = vrot.lane.b32.xlu0 %v100, 127
    %v104 = vpop.permute.xlu0 %103
    %v106 = vmax.f32 %v100, %v104
    %107 = vrot.lane.b32.xlu0 %v100, 126
    %v108 = vpop.permute.xlu0 %107
    %v110 = vmax.f32 %v106, %v108
    %v111 = vmax.f32 %v110, 0.0
    %v112 = vld [vmem:[%s1 + $0x20] sm:$0xff]
    %v113 = vld [vmem:[%s1 + $0x28] sm:$0xff]
    %v114 = vld [vmem:[%s1 + $0x30] sm:$0xff]
    %v115 = vld [vmem:[%s1 + $0x38] sm:$0xff]
    %v116 = vld [vmem:[%s1 + $0x40] sm:$0x3]
    %v117 = vld [vmem:[%s1 + $0xb2] sm:$0x1]
    %v118 = vperm.slane %v117, 0
    %vm119 = vcmask 277504
    %v121 = vsel %vm119, %v111, 0
    %vm123 = vcmask 1041408
    %v125 = vsel %vm123, %v116, 0
    %127 = vmatpush.msra.mxu0 0.0
    %128 = vmatpush.msra.mxu0 0.0
    %129 = vmatpush.msra.mxu0 0.0
    %130 = vmatpush.msra.mxu0 0.0
    %131 = vmatpush.msra.mxu0 0.0
    %132 = vmatpush.msra.mxu0 0.0
    %133 = vmatpush.msra.mxu0 0.0
    %134 = vmatpush.msra.mxu0 0.0
    %135 = vmatpush.msra.mxu0 0.0
    %136 = vmatpush.msra.mxu0 0.0
    %137 = vmatpush.msra.mxu0 0.0
    %138 = vmatpush.msra.mxu0 %v125
    %139 = vmatpush.msra.mxu0 %v115
    %140 = vmatpush.msra.mxu0 %v114
    %141 = vmatpush.msra.mxu0 %v113
    %142 = vmatpush.msra.mxu0 %v112
    %143 = vmatmul.f32.gmra.mxu0 %v121
    %v144 = vpop.f32.mrf.mxu0
    %v145 = vadd.f32 %v118, %v144
    %146 = vdwg.mxu0
    %148 = vrot.lane.b32.xlu0 %v145, 127
    %v149 = vpop.permute.xlu0 %148
    %v151 = vmax.f32 %v145, %v149
    %152 = vrot.lane.b32.xlu0 %v145, 126
    %v153 = vpop.permute.xlu0 %152
    %v155 = vmax.f32 %v151, %v153
    %v156 = vmax.f32 %v155, 0.0
    %v157 = vld [vmem:[%s1 + $0x48] sm:$0xff]
    %v158 = vld [vmem:[%s1 + $0x50] sm:$0xff]
    %v159 = vld [vmem:[%s1 + $0x58] sm:$0xff]
    %v160 = vld [vmem:[%s1 + $0x60] sm:$0xff]
    %v161 = vld [vmem:[%s1 + $0x68] sm:$0xff]
    %v162 = vld [vmem:[%s1 + $0x70] sm:$0xff]
    %v163 = vld [vmem:[%s1 + $0x78] sm:$0x3f]
    %v164 = vld [vmem:[%s1 + $0xb3] sm:$0x1]
    %v165 = vperm.slane %v164, 0
    %vm166 = vcmask 441344
    %v168 = vsel %vm166, %v156, 0
    %vm170 = vcmask 1045504
    %v172 = vsel %vm170, %v163, 0
    %174 = vmatpush.msra.mxu0 0.0
    %175 = vmatpush.msra.mxu0 0.0
    %176 = vmatpush.msra.mxu0 0.0
    %177 = vmatpush.msra.mxu0 0.0
    %178 = vmatpush.msra.mxu0 0.0
    %179 = vmatpush.msra.mxu0 0.0
    %180 = vmatpush.msra.mxu0 0.0
    %181 = vmatpush.msra.mxu0 0.0
    %182 = vmatpush.msra.mxu0 0.0
    %183 = vmatpush.msra.mxu0 %v172
    %184 = vmatpush.msra.mxu0 %v162
    %185 = vmatpush.msra.mxu0 %v161
    %186 = vmatpush.msra.mxu0 %v160
    %187 = vmatpush.msra.mxu0 %v159
    %188 = vmatpush.msra.mxu0 %v158
    %189 = vmatpush.msra.mxu0 %v157
    %190 = vmatmul.f32.gmra.mxu0 %v168
    %v191 = vpop.f32.mrf.mxu0
    %v192 = vadd.f32 %v165, %v191
    %193 = vdwg.mxu0
    %v194 = vmax.f32 %v192, 0.0
    %v195 = vld [vmem:[%s1 + $0x80] sm:$0xff]
    %v196 = vld [vmem:[%s1 + $0x88] sm:$0xff]
    %v197 = vld [vmem:[%s1 + $0x90] sm:$0xf]
    %v198 = vld [vmem:[%s1 + $0xb4] sm:$0x1]
    %v199 = vperm.slane %v198, 0
    %v201 = vsel %vm74, %v194, 0
    %v204 = vsel %vm78, %v197, 0
    %206 = vmatpush.msra.mxu0 0.0
    %207 = vmatpush.msra.mxu0 0.0
    %208 = vmatpush.msra.mxu0 0.0
    %209 = vmatpush.msra.mxu0 0.0
    %210 = vmatpush.msra.mxu0 0.0
    %211 = vmatpush.msra.mxu0 0.0
    %212 = vmatpush.msra.mxu0 0.0
    %213 = vmatpush.msra.mxu0 0.0
    %214 = vmatpush.msra.mxu0 0.0
    %215 = vmatpush.msra.mxu0 0.0
    %216 = vmatpush.msra.mxu0 0.0
    %217 = vmatpush.msra.mxu0 0.0
    %218 = vmatpush.msra.mxu0 0.0
    %219 = vmatpush.msra.mxu0 %v204
    %220 = vmatpush.msra.mxu0 %v196
    %221 = vmatpush.msra.mxu0 %v195
    %222 = vmatmul.f32.gmra.mxu0 %v201
    %v223 = vpop.f32.mrf.mxu0
    %v224 = vadd.f32 %v199, %v223
    %225 = vdwg.mxu0
    %v226 = vmax.f32 %v224, 0.0
    %v227 = vld [vmem:[%s1 + $0x98] sm:$0xff]
    %v228 = vld [vmem:[%s1 + $0xa0] sm:$0xff]
    %v229 = vld [vmem:[%s1 + $0xb5] sm:$0x1]
    %v230 = vperm.slane %v229, 0
    %vm231 = vcmask 130048
    %v233 = vsel %vm231, %v226, 0
    %235 = vmatpush.msra.mxu0 0.0
    %236 = vmatpush.msra.mxu0 0.0
    %237 = vmatpush.msra.mxu0 0.0
    %238 = vmatpush.msra.mxu0 0.0
    %239 = vmatpush.msra.mxu0 0.0
    %240 = vmatpush.msra.mxu0 0.0
    %241 = vmatpush.msra.mxu0 0.0
    %242 = vmatpush.msra.mxu0 0.0
    %243 = vmatpush.msra.mxu0 0.0
    %244 = vmatpush.msra.mxu0 0.0
    %245 = vmatpush.msra.mxu0 0.0
    %246 = vmatpush.msra.mxu0 0.0
    %247 = vmatpush.msra.mxu0 0.0
    %248 = vmatpush.msra.mxu0 0.0
    %249 = vmatpush.msra.mxu0 %v228
    %250 = vmatpush.msra.mxu0 %v227
    %251 = vmatmul.f32.gmra.mxu0 %v233
    %v252 = vpop.f32.mrf.mxu0
    %v253 = vadd.f32 %v230, %v252
    %254 = vdwg.mxu0
    %v255 = vld [vmem:[%s1 + $0xa8] sm:$0xff]
    %v256 = vlaneseq
    %v257 = vand.u32 %v256, 127
    %vm258 = vcmp.ge.s32.totalorder %v257, 16
    %vm259 = vcmp.lt.s32.totalorder %v257, 24
    %vm260 = vmand %vm258, %vm259
    %v261 = vsel %vm260, 1.0, 0.5
    %v262 = vsel %vm260, 0.0, 0.5
    %v263 = vld [vmem:[#allocation2] sm:$0x1]
    %v264 = vld [vmem:[#allocation2 + $0x1] sm:$0x1]
    %v266 = vsel %vm36, %v263, 0
    %268 = vmatpush.msra.mxu0 0.0
    %269 = vmatpush.msra.mxu0 0.0
    %270 = vmatpush.msra.mxu0 0.0
    %271 = vmatpush.msra.mxu0 0.0
    %272 = vmatpush.msra.mxu0 0.0
    %273 = vmatpush.msra.mxu0 0.0
    %274 = vmatpush.msra.mxu0 0.0
    %275 = vmatpush.msra.mxu0 0.0
    %276 = vmatpush.msra.mxu0 0.0
    %277 = vmatpush.msra.mxu0 0.0
    %278 = vmatpush.msra.mxu0 0.0
    %279 = vmatpush.msra.mxu0 0.0
    %280 = vmatpush.msra.mxu0 0.0
    %281 = vmatpush.msra.mxu0 0.0
    %282 = vmatpush.msra.mxu0 0.0
    %283 = vmatpush.msra.mxu0 %v255
    %284 = vmatmul.f32.gmra.mxu0 %v266
    %v285 = vpop.f32.mrf.mxu0
    %v286 = vadd.f32 0.0, %v285
    %287 = vdwg.mxu0
    %v288 = vadd.f32 %v253, %v286
    %v289 = vmul.f32 %v288, %v261
    %v290 = vtanh.pop %v289
    %v291 = vmul.f32 %v290, %v261
    %v292 = vadd.f32 %v291, %v262
    %294 = vrot.lane.b32.xlu0 %v264, 8
    %v295 = vpop.permute.xlu0 %294
    %v297 = vmul.f32 %v292, %v295
    %299 = vrot.lane.b32.xlu0 %v292, 112
    %v300 = vpop.permute.xlu0 %299
    %v302 = vmul.f32 %v292, %v300
    %304 = vrot.lane.b32.xlu0 %v302, 8
    %v305 = vpop.permute.xlu0 %304
    %v307 = vadd.f32 %v297, %v305
    %v308 = vtanh.pop %v307
    %310 = vrot.lane.b32.xlu0 %v308, 16
    %v311 = vpop.permute.xlu0 %310
    %v313 = vmul.f32 %v292, %v311
    %315 = vrot.lane.b32.xlu0 %v313, 104
    %v316 = vpop.permute.xlu0 %315
    %vm318 = vcmask 57344
    %319 = vst.msk [vmem:[#allocation5] sm:$0x1] %vm318, %v316
    %v320 = vsel %vm36, %v316, 0
    %322 = vmatpush.msra.mxu0 0.0
    %323 = vmatpush.msra.mxu0 0.0
    %324 = vmatpush.msra.mxu0 0.0
    %325 = vmatpush.msra.mxu0 0.0
    %326 = vmatpush.msra.mxu0 0.0
    %327 = vmatpush.msra.mxu0 0.0
    %328 = vmatpush.msra.mxu0 0.0
    %329 = vmatpush.msra.mxu0 0.0
    %330 = vmatpush.msra.mxu0 0.0
    %331 = vmatpush.msra.mxu0 0.0
    %332 = vmatpush.msra.mxu0 0.0
    %333 = vmatpush.msra.mxu0 0.0
    %334 = vmatpush.msra.mxu0 0.0
    %335 = vmatpush.msra.mxu0 0.0
    %336 = vmatpush.msra.mxu0 0.0
    %337 = vmatpush.msra.mxu0 %v255
    %338 = vmatmul.f32.gmra.mxu0 %v320
    %v339 = vpop.f32.mrf.mxu0
    %v340 = vadd.f32 0.0, %v339
    %341 = vdwg.mxu0
    %v343 = vrot.slane %v340, 7
    %v345 = vadd.f32 %v253, %v343
    %v346 = vmul.f32 %v345, %v261
    %v347 = vtanh.pop %v346
    %v348 = vmul.f32 %v347, %v261
    %v349 = vadd.f32 %v348, %v262
    %v351 = vrot.slane %v307, 7
    %v353 = vmul.f32 %v349, %v351
    %355 = vrot.lane.b32.xlu0 %v349, 112
    %v356 = vpop.permute.xlu0 %355
    %v358 = vmul.f32 %v349, %v356
    %360 = vrot.lane.b32.xlu0 %v358, 8
    %v361 = vpop.permute.xlu0 %360
    %v363 = vadd.f32 %v353, %v361
    %v364 = vtanh.pop %v363
    %366 = vrot.lane.b32.xlu0 %v364, 16
    %v367 = vpop.permute.xlu0 %366
    %v369 = vmul.f32 %v349, %v367
    %371 = vrot.lane.b32.xlu0 %v369, 104
    %v372 = vpop.permute.xlu0 %371
    %vm374 = vcmask 58369
    %375 = vst.msk [vmem:[#allocation5] sm:$0x2] %vm374, %v372
    %v376 = vrot.slane %v369, 1
    %377 = vrot.lane.b32.xlu0 %v376, 104
    %v378 = vpop.permute.xlu0 %377
    %v379 = vsel %vm36, %v378, 0
    %381 = vmatpush.msra.mxu0 0.0
    %382 = vmatpush.msra.mxu0 0.0
    %383 = vmatpush.msra.mxu0 0.0
    %384 = vmatpush.msra.mxu0 0.0
    %385 = vmatpush.msra.mxu0 0.0
    %386 = vmatpush.msra.mxu0 0.0
    %387 = vmatpush.msra.mxu0 0.0
    %388 = vmatpush.msra.mxu0 0.0
    %389 = vmatpush.msra.mxu0 0.0
    %390 = vmatpush.msra.mxu0 0.0
    %391 = vmatpush.msra.mxu0 0.0
    %392 = vmatpush.msra.mxu0 0.0
    %393 = vmatpush.msra.mxu0 0.0
    %394 = vmatpush.msra.mxu0 0.0
    %395 = vmatpush.msra.mxu0 0.0
    %396 = vmatpush.msra.mxu0 %v255
    %397 = vmatmul.f32.gmra.mxu0 %v379
    %v398 = vpop.f32.mrf.mxu0
    %v399 = vadd.f32 0.0, %v398
    %400 = vdwg.mxu0
    %v402 = vrot.slane %v399, 6
    %v404 = vadd.f32 %v253, %v402
    %v405 = vmul.f32 %v404, %v261
    %v406 = vtanh.pop %v405
    %v407 = vmul.f32 %v406, %v261
    %v408 = vadd.f32 %v407, %v262
    %v410 = vrot.slane %v363, 7
    %v412 = vmul.f32 %v408, %v410
    %414 = vrot.lane.b32.xlu0 %v408, 112
    %v415 = vpop.permute.xlu0 %414
    %v417 = vmul.f32 %v408, %v415
    %419 = vrot.lane.b32.xlu0 %v417, 8
    %v420 = vpop.permute.xlu0 %419
    %v422 = vadd.f32 %v412, %v420
    %v423 = vtanh.pop %v422
    %425 = vrot.lane.b32.xlu0 %v423, 16
    %v426 = vpop.permute.xlu0 %425
    %v428 = vmul.f32 %v408, %v426
    %430 = vrot.lane.b32.xlu0 %v428, 104
    %v431 = vpop.permute.xlu0 %430
    %vm433 = vcmask 59394
    %434 = vst.msk [vmem:[#allocation5] sm:$0x4] %vm433, %v431
    %v435 = vrot.slane %v428, 2
    %436 = vrot.lane.b32.xlu0 %v435, 104
    %v437 = vpop.permute.xlu0 %436
    %v438 = vsel %vm36, %v437, 0
    %440 = vmatpush.msra.mxu0 0.0
    %441 = vmatpush.msra.mxu0 0.0
    %442 = vmatpush.msra.mxu0 0.0
    %443 = vmatpush.msra.mxu0 0.0
    %444 = vmatpush.msra.mxu0 0.0
    %445 = vmatpush.msra.mxu0 0.0
    %446 = vmatpush.msra.mxu0 0.0
    %447 = vmatpush.msra.mxu0 0.0
    %448 = vmatpush.msra.mxu0 0.0
    %449 = vmatpush.msra.mxu0 0.0
    %450 = vmatpush.msra.mxu0 0.0
    %451 = vmatpush.msra.mxu0 0.0
    %452 = vmatpush.msra.mxu0 0.0
    %453 = vmatpush.msra.mxu0 0.0
    %454 = vmatpush.msra.mxu0 0.0
    %455 = vmatpush.msra.mxu0 %v255
    %456 = vmatmul.f32.gmra.mxu0 %v438
    %v457 = vpop.f32.mrf.mxu0
    %v458 = vadd.f32 0.0, %v457
    %459 = vdwg.mxu0
    %v461 = vrot.slane %v458, 5
    %v463 = vadd.f32 %v253, %v461
    %v464 = vmul.f32 %v463, %v261
    %v465 = vtanh.pop %v464
    %v466 = vmul.f32 %v465, %v261
    %v467 = vadd.f32 %v466, %v262
    %v469 = vrot.slane %v422, 7
    %v471 = vmul.f32 %v467, %v469
    %473 = vrot.lane.b32.xlu0 %v467, 112
    %v474 = vpop.permute.xlu0 %473
    %v476 = vmul.f32 %v467, %v474
    %478 = vrot.lane.b32.xlu0 %v476, 8
    %v479 = vpop.permute.xlu0 %478
    %v481 = vadd.f32 %v471, %v479
    %v482 = vtanh.pop %v481
    %484 = vrot.lane.b32.xlu0 %v482, 16
    %v485 = vpop.permute.xlu0 %484
    %v487 = vmul.f32 %v467, %v485
    %489 = vrot.lane.b32.xlu0 %v487, 104
    %v490 = vpop.permute.xlu0 %489
    %vm492 = vcmask 60419
    %493 = vst.msk [vmem:[#allocation5] sm:$0x8] %vm492, %v490
    %v494 = vrot.slane %v487, 3
    %495 = vrot.lane.b32.xlu0 %v494, 104
    %v496 = vpop.permute.xlu0 %495
    %v497 = vsel %vm36, %v496, 0
    %499 = vmatpush.msra.mxu0 0.0
    %500 = vmatpush.msra.mxu0 0.0
    %501 = vmatpush.msra.mxu0 0.0
    %502 = vmatpush.msra.mxu0 0.0
    %503 = vmatpush.msra.mxu0 0.0
    %504 = vmatpush.msra.mxu0 0.0
    %505 = vmatpush.msra.mxu0 0.0
    %506 = vmatpush.msra.mxu0 0.0
    %507 = vmatpush.msra.mxu0 0.0
    %508 = vmatpush.msra.mxu0 0.0
    %509 = vmatpush.msra.mxu0 0.0
    %510 = vmatpush.msra.mxu0 0.0
    %511 = vmatpush.msra.mxu0 0.0
    %512 = vmatpush.msra.mxu0 0.0
    %513 = vmatpush.msra.mxu0 0.0
    %514 = vmatpush.msra.mxu0 %v255
    %515 = vmatmul.f32.gmra.mxu0 %v497
    %v516 = vpop.f32.mrf.mxu0
    %v517 = vadd.f32 0.0, %v516
    %518 = vdwg.mxu0
    %v520 = vrot.slane %v517, 4
    %v522 = vadd.f32 %v253, %v520
    %v523 = vmul.f32 %v522, %v261
    %v524 = vtanh.pop %v523
    %v525 = vmul.f32 %v524, %v261
    %v526 = vadd.f32 %v525, %v262
    %v528 = vrot.slane %v481, 7
    %v530 = vmul.f32 %v526, %v528
    %532 = vrot.lane.b32.xlu0 %v526, 112
    %v533 = vpop.permute.xlu0 %532
    %v535 = vmul.f32 %v526, %v533
    %537 = vrot.lane.b32.xlu0 %v535, 8
    %v538 = vpop.permute.xlu0 %537
    %v540 = vadd.f32 %v530, %v538
    %v541 = vtanh.pop %v540
    %543 = vrot.lane.b32.xlu0 %v541, 16
    %v544 = vpop.permute.xlu0 %543
    %v546 = vmul.f32 %v526, %v544
    %548 = vrot.lane.b32.xlu0 %v546, 104
    %v549 = vpop.permute.xlu0 %548
    %vm551 = vcmask 61444
    %552 = vst.msk [vmem:[#allocation5] sm:$0x10] %vm551, %v549
    %v553 = vrot.slane %v546, 4
    %554 = vrot.lane.b32.xlu0 %v553, 104
    %v555 = vpop.permute.xlu0 %554
    %v556 = vsel %vm36, %v555, 0
    %558 = vmatpush.msra.mxu0 0.0
    %559 = vmatpush.msra.mxu0 0.0
    %560 = vmatpush.msra.mxu0 0.0
    %561 = vmatpush.msra.mxu0 0.0
    %562 = vmatpush.msra.mxu0 0.0
    %563 = vmatpush.msra.mxu0 0.0
    %564 = vmatpush.msra.mxu0 0.0
    %565 = vmatpush.msra.mxu0 0.0
    %566 = vmatpush.msra.mxu0 0.0
    %567 = vmatpush.msra.mxu0 0.0
    %568 = vmatpush.msra.mxu0 0.0
    %569 = vmatpush.msra.mxu0 0.0
    %570 = vmatpush.msra.mxu0 0.0
    %571 = vmatpush.msra.mxu0 0.0
    %572 = vmatpush.msra.mxu0 0.0
    %573 = vmatpush.msra.mxu0 %v255
    %574 = vmatmul.f32.gmra.mxu0 %v556
    %v575 = vpop.f32.mrf.mxu0
    %v576 = vadd.f32 0.0, %v575
    %577 = vdwg.mxu0
    %v579 = vrot.slane %v576, 3
    %v581 = vadd.f32 %v253, %v579
    %v582 = vmul.f32 %v581, %v261
    %v583 = vtanh.pop %v582
    %v584 = vmul.f32 %v583, %v261
    %v585 = vadd.f32 %v584, %v262
    %v587 = vrot.slane %v540, 7
    %v589 = vmul.f32 %v585, %v587
    %591 = vrot.lane.b32.xlu0 %v585, 112
    %v592 = vpop.permute.xlu0 %591
    %v594 = vmul.f32 %v585, %v592
    %596 = vrot.lane.b32.xlu0 %v594, 8
    %v597 = vpop.permute.xlu0 %596
    %v599 = vadd.f32 %v589, %v597
    %v600 = vtanh.pop %v599
    %602 = vrot.lane.b32.xlu0 %v600, 16
    %v603 = vpop.permute.xlu0 %602
    %v605 = vmul.f32 %v585, %v603
    %607 = vrot.lane.b32.xlu0 %v605, 104
    %v608 = vpop.permute.xlu0 %607
    %vm610 = vcmask 62469
    %611 = vst.msk [vmem:[#allocation5] sm:$0x20] %vm610, %v608
    %v612 = vrot.slane %v605, 5
    %613 = vrot.lane.b32.xlu0 %v612, 104
    %v614 = vpop.permute.xlu0 %613
    %v615 = vsel %vm36, %v614, 0
    %617 = vmatpush.msra.mxu0 0.0
    %618 = vmatpush.msra.mxu0 0.0
    %619 = vmatpush.msra.mxu0 0.0
    %620 = vmatpush.msra.mxu0 0.0
    %621 = vmatpush.msra.mxu0 0.0
    %622 = vmatpush.msra.mxu0 0.0
    %623 = vmatpush.msra.mxu0 0.0
    %624 = vmatpush.msra.mxu0 0.0
    %625 = vmatpush.msra.mxu0 0.0
    %626 = vmatpush.msra.mxu0 0.0
    %627 = vmatpush.msra.mxu0 0.0
    %628 = vmatpush.msra.mxu0 0.0
    %629 = vmatpush.msra.mxu0 0.0
    %630 = vmatpush.msra.mxu0 0.0
    %631 = vmatpush.msra.mxu0 0.0
    %632 = vmatpush.msra.mxu0 %v255
    %633 = vmatmul.f32.gmra.mxu0 %v615
    %v634 = vpop.f32.mrf.mxu0
    %v635 = vadd.f32 0.0, %v634
    %636 = vdwg.mxu0
    %v638 = vrot.slane %v635, 2
    %v640 = vadd.f32 %v253, %v638
    %v641 = vmul.f32 %v640, %v261
    %v642 = vtanh.pop %v641
    %v643 = vmul.f32 %v642, %v261
    %v644 = vadd.f32 %v643, %v262
    %v646 = vrot.slane %v599, 7
    %v648 = vmul.f32 %v644, %v646
    %650 = vrot.lane.b32.xlu0 %v644, 112
    %v651 = vpop.permute.xlu0 %650
    %v653 = vmul.f32 %v644, %v651
    %655 = vrot.lane.b32.xlu0 %v653, 8
    %v656 = vpop.permute.xlu0 %655
    %v658 = vadd.f32 %v648, %v656
    %v659 = vtanh.pop %v658
    %661 = vrot.lane.b32.xlu0 %v659, 16
    %v662 = vpop.permute.xlu0 %661
    %v664 = vmul.f32 %v644, %v662
    %666 = vrot.lane.b32.xlu0 %v664, 104
    %v667 = vpop.permute.xlu0 %666
    %vm669 = vcmask 63494
    %670 = vst.msk [vmem:[#allocation5] sm:$0x40] %vm669, %v667
    %v671 = vrot.slane %v664, 6
    %672 = vrot.lane.b32.xlu0 %v671, 104
    %v673 = vpop.permute.xlu0 %672
    %v674 = vsel %vm36, %v673, 0
    %676 = vmatpush.msra.mxu0 0.0
    %677 = vmatpush.msra.mxu0 0.0
    %678 = vmatpush.msra.mxu0 0.0
    %679 = vmatpush.msra.mxu0 0.0
    %680 = vmatpush.msra.mxu0 0.0
    %681 = vmatpush.msra.mxu0 0.0
    %682 = vmatpush.msra.mxu0 0.0
    %683 = vmatpush.msra.mxu0 0.0
    %684 = vmatpush.msra.mxu0 0.0
    %685 = vmatpush.msra.mxu0 0.0
    %686 = vmatpush.msra.mxu0 0.0
    %687 = vmatpush.msra.mxu0 0.0
    %688 = vmatpush.msra.mxu0 0.0
    %689 = vmatpush.msra.mxu0 0.0
    %690 = vmatpush.msra.mxu0 0.0
    %691 = vmatpush.msra.mxu0 %v255
    %692 = vmatmul.f32.gmra.mxu0 %v674
    %v693 = vpop.f32.mrf.mxu0
    %v694 = vadd.f32 0.0, %v693
    %695 = vdwg.mxu0
    %v697 = vrot.slane %v694, 1
    %v699 = vadd.f32 %v253, %v697
    %v700 = vmul.f32 %v699, %v261
    %v701 = vtanh.pop %v700
    %v702 = vmul.f32 %v701, %v261
    %v703 = vadd.f32 %v702, %v262
    %v705 = vrot.slane %v658, 7
    %v707 = vmul.f32 %v703, %v705
    %709 = vrot.lane.b32.xlu0 %v703, 112
    %v710 = vpop.permute.xlu0 %709
    %v712 = vmul.f32 %v703, %v710
    %714 = vrot.lane.b32.xlu0 %v712, 8
    %v715 = vpop.permute.xlu0 %714
    %v717 = vadd.f32 %v707, %v715
    %v718 = vtanh.pop %v717
    %720 = vrot.lane.b32.xlu0 %v718, 16
    %v721 = vpop.permute.xlu0 %720
    %v723 = vmul.f32 %v703, %v721
    %725 = vrot.lane.b32.xlu0 %v723, 104
    %v726 = vpop.permute.xlu0 %725
    %vm728 = vcmask 64519
    %729 = vst.msk [vmem:[#allocation5] sm:$0x80] %vm728, %v726
    %730 = vst.msk [vmem:[#allocation6 - $0x7] sm:$0x80] %vm728, %v726
    %732 = vrot.lane.b32.xlu0 %v717, 120
    %v733 = vpop.permute.xlu0 %732
    %735 = vst.msk [vmem:[#allocation6 - $0x6] sm:$0x80] %vm728, %v733
    // Predicated region
    $region18: #{lstm_rollout.1} parent=1 // pred_check
      _
    $region19: #{lstm_rollout.1} parent=1 // pred_check_branch
      %737 = sbr.rel (0) target = $region21
    $region20: #{lstm_rollout.1} parent=1 // pred_region
      %739 = vsyncadd [#allocation4], 0
      %s741 = sshll.u32 [#allocation5], 4
      %s742 = int_to_ptr.vmem [resolvable:$true] %s741
      %s743 = sshll.u32 %s3, 4
      %s744 = int_to_ptr.hbm [resolvable:$true] %s743
      %746 = dma.vmem_to_hbm [thread:$0]  %s742, 128, %s744, [#allocation4]
    $region21: #{lstm_rollout.1} parent=1 // pred_fallthru
      _
    // Predicated region
    $region22: #{lstm_rollout.1} parent=1 // pred_check
      _
    $region23: #{lstm_rollout.1} parent=1 // pred_check_branch
      %748 = sbr.rel (0) target = $region25
    $region24: #{lstm_rollout.1} parent=1 // pred_region
      %750 = vsyncadd [#allocation7], 0
      %s752 = sshll.u32 [#allocation6], 4
      %s753 = int_to_ptr.vmem [resolvable:$true] %s752
      %s754 = sshll.u32 %s4, 4
      %s755 = int_to_ptr.hbm [resolvable:$true] %s754
      %757 = dma.vmem_to_hbm [thread:$0]  %s753, 32, %s755, [#allocation7]
    $region25: #{lstm_rollout.1} parent=1 // pred_fallthru
      _
    // Predicated region
    $region26: #{lstm_rollout.1} parent=1 // pred_check
      _
    $region27: #{lstm_rollout.1} parent=1 // pred_check_branch
      %759 = sbr.rel (0) target = $region29
    $region28: #{lstm_rollout.1} parent=1 // pred_region
      %761 = dma.done [#allocation4], 128
    $region29: #{lstm_rollout.1} parent=1 // pred_fallthru
      _
    // Predicated region
    $region30: #{lstm_rollout.1} parent=1 // pred_check
      _
    $region31: #{lstm_rollout.1} parent=1 // pred_check_branch
      %763 = sbr.rel (0) target = $region33
    $region32: #{lstm_rollout.1} parent=1 // pred_region
      %765 = dma.done [#allocation7], 32
    $region33: #{lstm_rollout.1} parent=1 // pred_fallthru
      _
    %766 = vsyncpa [#allocation3], 1
    %767 = vsyncpa [#allocation4], 1
    %768 = vsyncpa [#allocation7], 1

</llo_original>
